<compile_context>
chip_gen: v7x
topology: tpu7x:2x2x1
jax: 0.10.0
libtpu: 0.0.40
codegen_flags: <defaults>
</compile_context>

<pallas_src>
import jax
import jax.numpy as jnp
from jax.experimental import pallas as pl
from jax.experimental.pallas import tpu as pltpu

LN_EPS = 1e-5  # PyTorch nn.LayerNorm default


def _round_up(x, m):
    return ((x + m - 1) // m) * m


def _vmem_limit_bytes():
    """Device-aware VMEM limit (leave ~20% headroom for compiler scratch)."""
    cap = 64 * 1024 * 1024  # conservative floor (v7x per-TensorCore VMEM)
    try:
        info = pltpu.get_tpu_info()
        cap = int(getattr(info, "vmem_capacity_bytes", cap) or cap)
    except Exception:
        pass
    return int(cap * 0.8)


def _tf_candidates(F):
    """Lane-aligned FFN-tile candidates (divide F, multiple of 128), descending."""
    cands = {F}
    d = 128
    while d < F:
        if F % d == 0:
            cands.add(d)
        d += 128
    return sorted(cands, reverse=True)


def ffn_mlp_kernel(x_ref, w1_ref, b1_ref, w2_ref, b2_ref, g_ref, beta_ref,
                   o_ref, acc_ref):
    f = pl.program_id(1)

    @pl.when(f == 0)
    def _():
        acc_ref[...] = jnp.zeros_like(acc_ref)

    # linear1 (MXU-dtype inputs, f32 accumulation) + bias + ReLU, this F-tile.
    x_mxu = x_ref[...].astype(w1_ref.dtype)
    h = jnp.dot(x_mxu, w1_ref[...], preferred_element_type=jnp.float32)
    h = jnp.maximum(h + b1_ref[...].astype(jnp.float32), 0.0)
    # TODO(synk): dropout3/dropout4 are identity (eval mode); training-mode masking
    # would go here via pltpu.prng_seed / prng_random_bits.

    # Partial linear2 contribution of this F-tile, accumulated in f32.
    acc_ref[...] += jnp.dot(h.astype(w2_ref.dtype), w2_ref[...],
                            preferred_element_type=jnp.float32)

    @pl.when(f == pl.num_programs(1) - 1)
    def _():
        # residual + LayerNorm (two-pass variance, f32)
        r = (x_ref[...].astype(jnp.float32)
             + acc_ref[...]
             + b2_ref[...].astype(jnp.float32))
        mean = jnp.mean(r, axis=-1, keepdims=True)
        c = r - mean
        var = jnp.mean(c * c, axis=-1, keepdims=True)  # biased variance (PyTorch LayerNorm)
        inv = jax.lax.rsqrt(var + LN_EPS)
        out = c * inv * g_ref[...].astype(jnp.float32) + beta_ref[...].astype(jnp.float32)
        o_ref[...] = out.astype(o_ref.dtype)


def ffn_mlp(src, w1, b1, w2, b2, gamma, beta, *, tm=None, tf=None, mxu_dtype=None):
    """src: (..., D). Returns same shape/dtype.

    mxu_dtype: optional narrower dtype (e.g. jnp.bfloat16) for the MXU inputs
    (W1/W2 pre-cast here, x cast in-kernel); accumulation stays f32.
    """
    orig_shape = src.shape
    D = orig_shape[-1]
    F = w1.shape[1]
    x = src.reshape(-1, D)
    rows = x.shape[0]

    w_dtype = jnp.dtype(mxu_dtype) if mxu_dtype is not None else jnp.dtype(w1.dtype)
    w1c = w1.astype(w_dtype)
    w2c = w2.astype(w_dtype)

    itemsize_x = jnp.dtype(src.dtype).itemsize
    itemsize_w = w_dtype.itemsize

    vmem_limit = _vmem_limit_bytes()
    tile_budget = int(vmem_limit * 0.85)

    # ---- row tile ------------------------------------------------------------
    if tm is None:
        tm_sel = min(512, _round_up(rows, 8))
        # v7x megacore: ensure the "parallel" row axis has >= 2 tiles.
        if rows >= 16 and _round_up(rows, tm_sel) // tm_sel < 2:
            tm_sel = max(8, _round_up((rows + 1) // 2, 8))
    else:
        tm_sel = max(8, _round_up(tm, 8))

    def fixed_bytes(tm_):
        return (2 * tm_ * D * itemsize_x      # x tile (double buffered)
                + 2 * tm_ * D * itemsize_x    # out tile (double buffered)
                + tm_ * D * 4                 # f32 accumulator scratch
                + 6 * D * 4)                  # b2 / gamma / beta

    def per_f_bytes(tm_, tf_):
        return (2 * 2 * D * tf_ * itemsize_w      # W1 + W2 tiles (double buffered)
                + 2 * tf_ * 4                     # b1 tile
                + tm_ * tf_ * (4 + itemsize_w))   # f32 ReLU intermediate + MXU-dtype cast

    # ---- FFN tile ------------------------------------------------------------
    if tf is None:
        cands = _tf_candidates(F)
        tf_sel = None
        while True:
            for c in cands:  # largest first: c == F is the resident-weights fast path
                if fixed_bytes(tm_sel) + per_f_bytes(tm_sel, c) <= tile_budget:
                    tf_sel = c
                    break
            if tf_sel is not None or tm is not None or tm_sel <= 8:
                break
            tm_sel = max(8, _round_up(tm_sel // 2, 8))  # shrink rows before FFN tile
        if tf_sel is None:
            tf_sel = cands[-1]  # smallest lane-aligned candidate
    else:
        tf_sel = tf
    assert F % tf_sel == 0, "tf must divide d_ffn"

    rows_p = _round_up(rows, tm_sel)
    if rows_p != rows:
        x = jnp.pad(x, ((0, rows_p - rows), (0, 0)))

    b1_2d = b1.reshape(1, F)
    b2_2d = b2.reshape(1, D)
    g_2d = gamma.reshape(1, D)
    be_2d = beta.reshape(1, D)

    n_row = rows_p // tm_sel
    n_f = F // tf_sel

    weight_bytes = (w1c.size + w2c.size) * itemsize_w
    if n_f > 1:
        weight_bytes *= n_row  # weights re-streamed once per row tile
    cost = pl.CostEstimate(
        flops=4 * rows_p * D * F + 10 * rows_p * D,
        transcendentals=rows_p,
        bytes_accessed=int(
            rows_p * D * itemsize_x            # x in
            + weight_bytes                     # W1 + W2
            + (F + 3 * D) * 4                  # biases / LN params
            + rows_p * D * itemsize_x),        # out
    )

    out = pl.pallas_call(
        ffn_mlp_kernel,
        out_shape=jax.ShapeDtypeStruct((rows_p, D), src.dtype),
        grid_spec=pltpu.PrefetchScalarGridSpec(
            num_scalar_prefetch=0,
            grid=(n_row, n_f),                                 # reduction (F) axis last
            in_specs=[
                pl.BlockSpec((tm_sel, D), lambda i, f: (i, 0)),   # x row tile
                pl.BlockSpec((D, tf_sel), lambda i, f: (0, f)),   # W1 F-tile
                pl.BlockSpec((1, tf_sel), lambda i, f: (0, f)),   # b1 F-tile
                pl.BlockSpec((tf_sel, D), lambda i, f: (f, 0)),   # W2 F-tile
                pl.BlockSpec((1, D), lambda i, f: (0, 0)),        # b2
                pl.BlockSpec((1, D), lambda i, f: (0, 0)),        # gamma
                pl.BlockSpec((1, D), lambda i, f: (0, 0)),        # beta
            ],
            out_specs=pl.BlockSpec((tm_sel, D), lambda i, f: (i, 0)),
            scratch_shapes=[pltpu.VMEM((tm_sel, D), jnp.float32)],  # f32 accumulator
        ),
        compiler_params=pltpu.CompilerParams(
            dimension_semantics=("parallel", "arbitrary"),
            vmem_limit_bytes=vmem_limit,
        ),
        cost_estimate=cost,
    )(x, w1c, b1_2d, w2c, b2_2d, g_2d, be_2d)

    if rows_p != rows:
        out = out[:rows]
    return out.reshape(orig_shape)


def reference(src, w1, b1, w2, b2, gamma, beta):
    x = src.astype(jnp.float32)
    h = jnp.maximum(x @ w1 + b1, 0.0)
    y = h @ w2 + b2
    r = x + y
    mean = r.mean(axis=-1, keepdims=True)
    var = ((r - mean) ** 2).mean(axis=-1, keepdims=True)
    return ((r - mean) / jnp.sqrt(var + LN_EPS)) * gamma + beta


def _make_params(key, feature_dim, d_ffn):
    ks = jax.random.split(key, 5)
    lim1 = 1.0 / (feature_dim ** 0.5)
    lim2 = 1.0 / (d_ffn ** 0.5)
    w1 = jax.random.uniform(ks[0], (feature_dim, d_ffn), minval=-lim1, maxval=lim1)
    b1 = jax.random.uniform(ks[1], (d_ffn,), minval=-lim1, maxval=lim1)
    w2 = jax.random.uniform(ks[2], (d_ffn, feature_dim), minval=-lim2, maxval=lim2)
    b2 = jax.random.uniform(ks[3], (feature_dim,), minval=-lim2, maxval=lim2)
    gamma = jnp.ones((feature_dim,), jnp.float32)
    beta = jnp.zeros((feature_dim,), jnp.float32)
    return w1, b1, w2, b2, gamma, beta


if __name__ == "__main__":
    key = jax.random.PRNGKey(0)
    k_src1, k_src2, k_src3, k_p1, k_p2, k_p3 = jax.random.split(key, 6)

    # Test 1: resident-weights fast path (batch=2, seq=8, D=32, F=128), default tiles.
    batch, seq, feature_dim, d_ffn = 2, 8, 32, 128
    src = jax.random.normal(k_src1, (batch, seq, feature_dim), dtype=jnp.float32)
    params = _make_params(k_p1, feature_dim, d_ffn)
    out = jax.block_until_ready(ffn_mlp(src, *params))
    ref = reference(src, *params)
    assert out.shape == src.shape and out.dtype == src.dtype
    assert jnp.allclose(out, ref, atol=1e-4, rtol=1e-4), "mismatch vs reference (test 1)"

    # Test 2: ragged rows + multi-tile grid (row padding, 2 row tiles x 2 F tiles).
    batch, seq, feature_dim, d_ffn = 2, 5, 32, 256
    src = jax.random.normal(k_src2, (batch, seq, feature_dim), dtype=jnp.float32)
    params = _make_params(k_p2, feature_dim, d_ffn)
    out = jax.block_until_ready(ffn_mlp(src, *params, tm=8, tf=128))
    ref = reference(src, *params)
    assert out.shape == src.shape and out.dtype == src.dtype
    assert jnp.allclose(out, ref, atol=1e-4, rtol=1e-4), "mismatch vs reference (test 2)"

    # Test 3: bf16 MXU inputs with f32 accumulation (f32 model), default tiles.
    batch, seq, feature_dim, d_ffn = 2, 8, 128, 1024
    src = jax.random.normal(k_src3, (batch, seq, feature_dim), dtype=jnp.float32)
    params = _make_params(k_p3, feature_dim, d_ffn)
    out = jax.block_until_ready(ffn_mlp(src, *params, mxu_dtype=jnp.bfloat16))
    ref = reference(src, *params)
    assert out.shape == src.shape and out.dtype == src.dtype
    assert jnp.allclose(out, ref, atol=5e-2, rtol=5e-2), "mismatch vs reference (test 3)"

    print("KERNEL_OK")
</pallas_src>

<mosaic_0001>
module attributes {stable_mosaic.version = 11 : i64} {
  func.func @ffn_mlp_kernel(%arg0: i32, %arg1: i32, %arg2: memref<8x32xf32, #tpu.memory_space<vmem>>, %arg3: memref<32x128xf32, #tpu.memory_space<vmem>>, %arg4: memref<1x128xf32, #tpu.memory_space<vmem>>, %arg5: memref<128x32xf32, #tpu.memory_space<vmem>>, %arg6: memref<1x32xf32, #tpu.memory_space<vmem>>, %arg7: memref<1x32xf32, #tpu.memory_space<vmem>>, %arg8: memref<1x32xf32, #tpu.memory_space<vmem>>, %arg9: memref<8x32xf32, #tpu.memory_space<vmem>>, %arg10: memref<8x32xf32, #tpu.memory_space<vmem>>) attributes {dimension_semantics = [#tpu.dimension_semantics<parallel>, #tpu.dimension_semantics<arbitrary>], iteration_bounds = array<i64: 2, 1>, scalar_prefetch = 0 : i64, scratch_operands = 1 : i64, tpu.core_type = #tpu.core_type<tc>, window_params = [{transform_indices = @transform_0, window_bounds = array<i64: 8, 32>}, {transform_indices = @transform_1, window_bounds = array<i64: 32, 128>}, {transform_indices = @transform_2, window_bounds = array<i64: 1, 128>}, {transform_indices = @transform_3, window_bounds = array<i64: 128, 32>}, {pipeline_mode = #tpu.pipeline_mode<synchronous>, transform_indices = @transform_4, window_bounds = array<i64: 1, 32>}, {pipeline_mode = #tpu.pipeline_mode<synchronous>, transform_indices = @transform_5, window_bounds = array<i64: 1, 32>}, {pipeline_mode = #tpu.pipeline_mode<synchronous>, transform_indices = @transform_6, window_bounds = array<i64: 1, 32>}, {transform_indices = @transform_7, window_bounds = array<i64: 8, 32>}]} {
    %c0_i32 = arith.constant 0 : i32
    %0 = arith.cmpi eq, %arg1, %c0_i32 : i32
    %1 = arith.extui %0 : i1 to i32
    %c0_i32_0 = arith.constant 0 : i32
    %2 = arith.cmpi ne, %1, %c0_i32_0 : i32
    scf.if %2 {
      %cst_16 = arith.constant 0.000000e+00 : f32
      %19 = vector.broadcast %cst_16 : f32 to vector<8x32xf32>
      %c0_17 = arith.constant 0 : index
      %c0_18 = arith.constant 0 : index
      %20 = vector.load %arg10[%c0_17, %c0_18] : memref<8x32xf32, #tpu.memory_space<vmem>>, vector<8x32xf32>
      tpu.vector_store %arg10[%c0_17, %c0_18], %19 {strides = array<i32>} : memref<8x32xf32, #tpu.memory_space<vmem>>, vector<8x32xf32>,
    } else {
    }
    %c0 = arith.constant 0 : index
    %c0_1 = arith.constant 0 : index
    %3 = vector.load %arg2[%c0, %c0_1] : memref<8x32xf32, #tpu.memory_space<vmem>>, vector<8x32xf32>
    %c0_2 = arith.constant 0 : index
    %c0_3 = arith.constant 0 : index
    %4 = vector.load %arg3[%c0_2, %c0_3] : memref<32x128xf32, #tpu.memory_space<vmem>>, vector<32x128xf32>
    %cst = arith.constant dense<0.000000e+00> : vector<8x128xf32>
    %5 = tpu.matmul %3, %4, %cst {dimension_numbers = #tpu.dot_dimension_numbers<[1], [0], [0], [1], [0, 0, 1, 1], [], []>} : vector<8x32xf32>, vector<32x128xf32>, vector<8x128xf32> -> vector<8x128xf32>
    %c0_4 = arith.constant 0 : index
    %c0_5 = arith.constant 0 : index
    %6 = vector.load %arg4[%c0_4, %c0_5] : memref<1x128xf32, #tpu.memory_space<vmem>>, vector<1x128xf32>
    %7 = vector.broadcast %6 : vector<1x128xf32> to vector<8x128xf32>
    %8 = arith.addf %5, %7 : vector<8x128xf32>
    %cst_6 = arith.constant 0.000000e+00 : f32
    %9 = vector.broadcast %cst_6 : f32 to vector<8x128xf32>
    %10 = arith.maximumf %8, %9 : vector<8x128xf32>
    %c0_7 = arith.constant 0 : index
    %c0_8 = arith.constant 0 : index
    %11 = vector.load %arg10[%c0_7, %c0_8] : memref<8x32xf32, #tpu.memory_space<vmem>>, vector<8x32xf32>
    %c0_9 = arith.constant 0 : index
    %c0_10 = arith.constant 0 : index
    %12 = vector.load %arg5[%c0_9, %c0_10] : memref<128x32xf32, #tpu.memory_space<vmem>>, vector<128x32xf32>
    %cst_11 = arith.constant dense<0.000000e+00> : vector<8x32xf32>
    %13 = tpu.matmul %10, %12, %cst_11 {dimension_numbers = #tpu.dot_dimension_numbers<[1], [0], [0], [1], [0, 0, 1, 1], [], []>} : vector<8x128xf32>, vector<128x32xf32>, vector<8x32xf32> -> vector<8x32xf32>
    %14 = arith.addf %11, %13 : vector<8x32xf32>
    %c0_12 = arith.constant 0 : index
    %c0_13 = arith.constant 0 : index
    %15 = vector.load %arg10[%c0_12, %c0_13] : memref<8x32xf32, #tpu.memory_space<vmem>>, vector<8x32xf32>
    tpu.vector_store %arg10[%c0_12, %c0_13], %14 {strides = array<i32>} : memref<8x32xf32, #tpu.memory_space<vmem>>, vector<8x32xf32>,
    %c0_i32_14 = arith.constant 0 : i32
    %16 = arith.cmpi eq, %arg1, %c0_i32_14 : i32
    %17 = arith.extui %16 : i1 to i32
    %c0_i32_15 = arith.constant 0 : i32
    %18 = arith.cmpi ne, %17, %c0_i32_15 : i32
    scf.if %18 {
      %c0_16 = arith.constant 0 : index
      %c0_17 = arith.constant 0 : index
      %19 = vector.load %arg2[%c0_16, %c0_17] : memref<8x32xf32, #tpu.memory_space<vmem>>, vector<8x32xf32>
      %c0_18 = arith.constant 0 : index
      %c0_19 = arith.constant 0 : index
      %20 = vector.load %arg10[%c0_18, %c0_19] : memref<8x32xf32, #tpu.memory_space<vmem>>, vector<8x32xf32>
      %21 = arith.addf %19, %20 : vector<8x32xf32>
      %c0_20 = arith.constant 0 : index
      %c0_21 = arith.constant 0 : index
      %22 = vector.load %arg6[%c0_20, %c0_21] : memref<1x32xf32, #tpu.memory_space<vmem>>, vector<1x32xf32>
      %23 = vector.broadcast %22 : vector<1x32xf32> to vector<8x32xf32>
      %24 = arith.addf %21, %23 : vector<8x32xf32>
      %cst_22 = arith.constant dense<0.000000e+00> : vector<8xf32>
      %25 = vector.multi_reduction <add>, %24, %cst_22 [1] : vector<8x32xf32> to vector<8xf32>
      %26 = vector.shape_cast %25 : vector<8xf32> to vector<8x1xf32>
      %cst_23 = arith.constant 3.200000e+01 : f32
      %27 = vector.broadcast %cst_23 : f32 to vector<8x1xf32>
      %28 = arith.divf %26, %27 : vector<8x1xf32>
      %29 = vector.broadcast %28 : vector<8x1xf32> to vector<8x32xf32>
      %30 = arith.subf %24, %29 : vector<8x32xf32>
      %31 = arith.mulf %30, %30 : vector<8x32xf32>
      %cst_24 = arith.constant dense<0.000000e+00> : vector<8xf32>
      %32 = vector.multi_reduction <add>, %31, %cst_24 [1] : vector<8x32xf32> to vector<8xf32>
      %33 = vector.shape_cast %32 : vector<8xf32> to vector<8x1xf32>
      %cst_25 = arith.constant 3.200000e+01 : f32
      %34 = vector.broadcast %cst_25 : f32 to vector<8x1xf32>
      %35 = arith.divf %33, %34 : vector<8x1xf32>
      %cst_26 = arith.constant 9.99999974E-6 : f32
      %36 = vector.broadcast %cst_26 : f32 to vector<8x1xf32>
      %37 = arith.addf %35, %36 : vector<8x1xf32>
      %38 = math.rsqrt %37 : vector<8x1xf32>
      %39 = vector.broadcast %38 : vector<8x1xf32> to vector<8x32xf32>
      %40 = arith.mulf %30, %39 : vector<8x32xf32>
      %c0_27 = arith.constant 0 : index
      %c0_28 = arith.constant 0 : index
      %41 = vector.load %arg7[%c0_27, %c0_28] : memref<1x32xf32, #tpu.memory_space<vmem>>, vector<1x32xf32>
      %42 = vector.broadcast %41 : vector<1x32xf32> to vector<8x32xf32>
      %43 = arith.mulf %40, %42 : vector<8x32xf32>
      %c0_29 = arith.constant 0 : index
      %c0_30 = arith.constant 0 : index
      %44 = vector.load %arg8[%c0_29, %c0_30] : memref<1x32xf32, #tpu.memory_space<vmem>>, vector<1x32xf32>
      %45 = vector.broadcast %44 : vector<1x32xf32> to vector<8x32xf32>
      %46 = arith.addf %43, %45 : vector<8x32xf32>
      %c0_31 = arith.constant 0 : index
      %c0_32 = arith.constant 0 : index
      %47 = vector.load %arg9[%c0_31, %c0_32] : memref<8x32xf32, #tpu.memory_space<vmem>>, vector<8x32xf32>
      tpu.vector_store %arg9[%c0_31, %c0_32], %46 {strides = array<i32>} : memref<8x32xf32, #tpu.memory_space<vmem>>, vector<8x32xf32>,
    } else {
    }
    return
  }
  func.func @transform_0(%arg0: i32, %arg1: i32) -> (i32, i32) {
    %c0_i32 = arith.constant 0 : i32
    %c0_i32_0 = arith.constant 0 : i32
    return %arg0, %c0_i32 : i32, i32
  }
  func.func @transform_1(%arg0: i32, %arg1: i32) -> (i32, i32) {
    %c0_i32 = arith.constant 0 : i32
    %c0_i32_0 = arith.constant 0 : i32
    return %c0_i32, %arg1 : i32, i32
  }
  func.func @transform_2(%arg0: i32, %arg1: i32) -> (i32, i32) {
    %c0_i32 = arith.constant 0 : i32
    %c0_i32_0 = arith.constant 0 : i32
    return %c0_i32, %arg1 : i32, i32
  }
  func.func @transform_3(%arg0: i32, %arg1: i32) -> (i32, i32) {
    %c0_i32 = arith.constant 0 : i32
    %c0_i32_0 = arith.constant 0 : i32
    return %arg1, %c0_i32 : i32, i32
  }
  func.func @transform_4(%arg0: i32, %arg1: i32) -> (i32, i32) {
    %c0_i32 = arith.constant 0 : i32
    %c0_i32_0 = arith.constant 0 : i32
    %c0_i32_1 = arith.constant 0 : i32
    return %c0_i32, %c0_i32_0 : i32, i32
  }
  func.func @transform_5(%arg0: i32, %arg1: i32) -> (i32, i32) {
    %c0_i32 = arith.constant 0 : i32
    %c0_i32_0 = arith.constant 0 : i32
    %c0_i32_1 = arith.constant 0 : i32
    return %c0_i32, %c0_i32_0 : i32, i32
  }
  func.func @transform_6(%arg0: i32, %arg1: i32) -> (i32, i32) {
    %c0_i32 = arith.constant 0 : i32
    %c0_i32_0 = arith.constant 0 : i32
    %c0_i32_1 = arith.constant 0 : i32
    return %c0_i32, %c0_i32_0 : i32, i32
  }
  func.func @transform_7(%arg0: i32, %arg1: i32) -> (i32, i32) {
    %c0_i32 = arith.constant 0 : i32
    %c0_i32_0 = arith.constant 0 : i32
    return %arg0, %c0_i32 : i32, i32
  }
}

</mosaic_0001>

<llo_original>
// kernel: tpu_custom_call.1
$region0: #{tpu_custom_call.1}
  #allocation0 [shape = 'u32[]', space=smem, size = 0x4, offset = 0x4, fixed_abs, tag = 'smem constant byte address 0x4 - core index']
  #allocation1 [shape = 'u32[144,128]{1,0:T(1,128)}', space=vmem, size = 0x12000, scoped, tag = 'internal scratch']
  #allocation2 [shape = 'f32[8,32]{1,0:T(8,128)}', space=vmem, size = 0x1000, scoped, tag = 'scratch operand']
  %s0 = inlined_call_operand.vmem [shape: f32[16,32], index: 0, kind: input, shape index: {}]
  %s1 = inlined_call_operand.vmem [shape: f32[32,128], index: 1, kind: input, shape index: {}]
  %s2 = inlined_call_operand.vmem [shape: f32[1,128], index: 2, kind: input, shape index: {}]
  %s3 = inlined_call_operand.vmem [shape: f32[128,32], index: 3, kind: input, shape index: {}]
  %s4 = inlined_call_operand.vmem [shape: f32[1,32], index: 4, kind: input, shape index: {}]
  %s5 = inlined_call_operand.vmem [shape: f32[1,32], index: 5, kind: input, shape index: {}]
  %s6 = inlined_call_operand.vmem [shape: f32[1,32], index: 6, kind: input, shape index: {}]
  %s7 = inlined_call_operand.hbm [shape: f32[16,32], index: 7, kind: output, shape index: {}]
  %s8 = sld [smem:[#allocation0]]
  $region69: #{tpu_custom_call.1} parent=0
    _
  %s10 = ssub.s32 1, %s8
  %s11 = scalar_select 0, %s10, %s8
  $region1: #{tpu_custom_call.1} parent=0
    #allocation3 [shape = 'u8[8192]{0}', space=vmem, size = 0x2000, scoped, tag = 'output window, operand 0']
    #allocation4 [shape = 's32[2]{0}', space=sflag, size = 0x8, scoped, tag = 'scoped memory for tpu_custom_call.1']
    %12 = vsyncpa [#allocation4], 0
    %s13 = scalar_lea.sflag [#allocation4], 1
    %14 = vsyncpa %s13, 0
    loop: start=0, step=1, limit=4
    $region2: #{tpu_custom_call.1} parent=1 // loop_pre_header
      _
    $region3: #{tpu_custom_call.1} parent=1 // loop_header
      %s16 = sphi 0, %s20
      %p17 = scmp.ge.s32.totalorder %s16, 4
      %s23 = sphi 0, %s35
      %s24 = sphi 0, %s31
      %s25 = sphi 0, %s23
      %s26 = sphi 0, %s24
      %s27 = sphi 0, %s25
      %s28 = sphi 0, %s26
      %s38 = sphi 0, %s40
      %s41 = sphi 0, %s38
      %s42 = sphi 0, %s41
      %s58 = sphi 0, %s42
      %s64 = sphi 0, %s66
      %s67 = sphi 0, %s64
      %s68 = sphi 0, %s67
      %s84 = sphi 0, %s68
      %s90 = sphi 0, %s92
      %s93 = sphi 0, %s90
      %s94 = sphi 0, %s93
      %s110 = sphi 0, %s94
      %s116 = sphi 0, %s118
      %s119 = sphi 0, %s116
      %s120 = sphi 0, %s119
      %s136 = sphi 0, %s120
      %s140 = sphi 0, %s140
      %s142 = sphi 0, %s140
      %s143 = sphi 0, %s142
      %s157 = sphi 0, %s143
      %s161 = sphi 0, %s161
      %s163 = sphi 0, %s161
      %s164 = sphi 0, %s163
      %s178 = sphi 0, %s164
      %s182 = sphi 0, %s182
      %s184 = sphi 0, %s182
      %s185 = sphi 0, %s184
      %s199 = sphi 0, %s185
      %s205 = sphi 0, %s207
      %s208 = sphi 0, %s205
      %s209 = sphi 0, %s208
      %s225 = sphi 0, %s209
    $region4: #{tpu_custom_call.1} parent=1 // loop_header_branch
      %19 = sbr.rel (%p17) target = $region8
    $region5: #{tpu_custom_call.1} parent=1 // loop_body
      %s21 = ssub.s32 %s16, 1
      %s22 = ssub.s32 %s16, 2
      %s29 = sadd.s32 1, %s24
      %p30 = scmp.ge.s32.totalorder %s29, 1
      %s31 = scalar_select %p30, 0, %s29
      %s32 = sadd.s32 1, %s23
      %s33 = scalar_select %p30, %s32, %s23
      %p34 = scmp.ge.s32.totalorder %s33, 2
      %s35 = scalar_select %p34, 0, %s33
      %s36 = ssub.s32 %s23, %s35
      %p37 = scmp.eq.s32.totalorder %s36, 0
      %s39 = sadd.s32 %s38, 1
      %s40 = scalar_select %p37, %s38, %s39
      %p43 = pneg %p37
      %p44 = scmp.eq.s32.totalorder %s16, 1
      %p45 = por %p43, %p44
      %p46 = scmp.ne.s32.totalorder %s38, %s41
      %p47 = scmp.eq.s32.totalorder %s16, 0
      %p48 = por %p46, %p47
      %p49 = scmp.ne.s32.totalorder %s38, %s41
      %p50 = scmp.eq.s32.totalorder %s21, 1
      %p51 = por %p49, %p50
      %p52 = scmp.ne.s32.totalorder %s41, %s42
      %p53 = scmp.eq.s32.totalorder %s21, 0
      %p54 = por %p52, %p53
      %p55 = scmp.ne.s32.totalorder %s41, %s42
      %p56 = scmp.eq.s32.totalorder %s22, 1
      %p57 = por %p55, %p56
      %p59 = scmp.ne.s32.totalorder %s42, %s58
      %p60 = scmp.eq.s32.totalorder %s22, 0
      %p61 = por %p59, %p60
      %s62 = ssub.s32 %s24, %s31
      %p63 = scmp.eq.s32.totalorder %s62, 0
      %s65 = sadd.s32 %s64, 1
      %s66 = scalar_select %p63, %s64, %s65
      %p69 = pneg %p63
      %p70 = scmp.eq.s32.totalorder %s16, 1
      %p71 = por %p69, %p70
      %p72 = scmp.ne.s32.totalorder %s64, %s67
      %p73 = scmp.eq.s32.totalorder %s16, 0
      %p74 = por %p72, %p73
      %p75 = scmp.ne.s32.totalorder %s64, %s67
      %p76 = scmp.eq.s32.totalorder %s21, 1
      %p77 = por %p75, %p76
      %p78 = scmp.ne.s32.totalorder %s67, %s68
      %p79 = scmp.eq.s32.totalorder %s21, 0
      %p80 = por %p78, %p79
      %p81 = scmp.ne.s32.totalorder %s67, %s68
      %p82 = scmp.eq.s32.totalorder %s22, 1
      %p83 = por %p81, %p82
      %p85 = scmp.ne.s32.totalorder %s68, %s84
      %p86 = scmp.eq.s32.totalorder %s22, 0
      %p87 = por %p85, %p86
      %s88 = ssub.s32 %s24, %s31
      %p89 = scmp.eq.s32.totalorder %s88, 0
      %s91 = sadd.s32 %s90, 1
      %s92 = scalar_select %p89, %s90, %s91
      %p95 = pneg %p89
      %p96 = scmp.eq.s32.totalorder %s16, 1
      %p97 = por %p95, %p96
      %p98 = scmp.ne.s32.totalorder %s90, %s93
      %p99 = scmp.eq.s32.totalorder %s16, 0
      %p100 = por %p98, %p99
      %p101 = scmp.ne.s32.totalorder %s90, %s93
      %p102 = scmp.eq.s32.totalorder %s21, 1
      %p103 = por %p101, %p102
      %p104 = scmp.ne.s32.totalorder %s93, %s94
      %p105 = scmp.eq.s32.totalorder %s21, 0
      %p106 = por %p104, %p105
      %p107 = scmp.ne.s32.totalorder %s93, %s94
      %p108 = scmp.eq.s32.totalorder %s22, 1
      %p109 = por %p107, %p108
      %p111 = scmp.ne.s32.totalorder %s94, %s110
      %p112 = scmp.eq.s32.totalorder %s22, 0
      %p113 = por %p111, %p112
      %s114 = ssub.s32 %s24, %s31
      %p115 = scmp.eq.s32.totalorder %s114, 0
      %s117 = sadd.s32 %s116, 1
      %s118 = scalar_select %p115, %s116, %s117
      %p121 = pneg %p115
      %p122 = scmp.eq.s32.totalorder %s16, 1
      %p123 = por %p121, %p122
      %p124 = scmp.ne.s32.totalorder %s116, %s119
      %p125 = scmp.eq.s32.totalorder %s16, 0
      %p126 = por %p124, %p125
      %p127 = scmp.ne.s32.totalorder %s116, %s119
      %p128 = scmp.eq.s32.totalorder %s21, 1
      %p129 = por %p127, %p128
      %p130 = scmp.ne.s32.totalorder %s119, %s120
      %p131 = scmp.eq.s32.totalorder %s21, 0
      %p132 = por %p130, %p131
      %p133 = scmp.ne.s32.totalorder %s119, %s120
      %p134 = scmp.eq.s32.totalorder %s22, 1
      %p135 = por %p133, %p134
      %p137 = scmp.ne.s32.totalorder %s120, %s136
      %p138 = scmp.eq.s32.totalorder %s22, 0
      %p139 = por %p137, %p138
      %s141 = sadd.s32 %s140, 1
      %p144 = scmp.eq.s32.totalorder %s16, 1
      %p145 = scmp.ne.s32.totalorder %s140, %s142
      %p146 = scmp.eq.s32.totalorder %s16, 0
      %p147 = por %p145, %p146
      %p148 = scmp.ne.s32.totalorder %s140, %s142
      %p149 = scmp.eq.s32.totalorder %s21, 1
      %p150 = por %p148, %p149
      %p151 = scmp.ne.s32.totalorder %s142, %s143
      %p152 = scmp.eq.s32.totalorder %s21, 0
      %p153 = por %p151, %p152
      %p154 = scmp.ne.s32.totalorder %s142, %s143
      %p155 = scmp.eq.s32.totalorder %s22, 1
      %p156 = por %p154, %p155
      %p158 = scmp.ne.s32.totalorder %s143, %s157
      %p159 = scmp.eq.s32.totalorder %s22, 0
      %p160 = por %p158, %p159
      %s162 = sadd.s32 %s161, 1
      %p165 = scmp.eq.s32.totalorder %s16, 1
      %p166 = scmp.ne.s32.totalorder %s161, %s163
      %p167 = scmp.eq.s32.totalorder %s16, 0
      %p168 = por %p166, %p167
      %p169 = scmp.ne.s32.totalorder %s161, %s163
      %p170 = scmp.eq.s32.totalorder %s21, 1
      %p171 = por %p169, %p170
      %p172 = scmp.ne.s32.totalorder %s163, %s164
      %p173 = scmp.eq.s32.totalorder %s21, 0
      %p174 = por %p172, %p173
      %p175 = scmp.ne.s32.totalorder %s163, %s164
      %p176 = scmp.eq.s32.totalorder %s22, 1
      %p177 = por %p175, %p176
      %p179 = scmp.ne.s32.totalorder %s164, %s178
      %p180 = scmp.eq.s32.totalorder %s22, 0
      %p181 = por %p179, %p180
      %s183 = sadd.s32 %s182, 1
      %p186 = scmp.eq.s32.totalorder %s16, 1
      %p187 = scmp.ne.s32.totalorder %s182, %s184
      %p188 = scmp.eq.s32.totalorder %s16, 0
      %p189 = por %p187, %p188
      %p190 = scmp.ne.s32.totalorder %s182, %s184
      %p191 = scmp.eq.s32.totalorder %s21, 1
      %p192 = por %p190, %p191
      %p193 = scmp.ne.s32.totalorder %s184, %s185
      %p194 = scmp.eq.s32.totalorder %s21, 0
      %p195 = por %p193, %p194
      %p196 = scmp.ne.s32.totalorder %s184, %s185
      %p197 = scmp.eq.s32.totalorder %s22, 1
      %p198 = por %p196, %p197
      %p200 = scmp.ne.s32.totalorder %s185, %s199
      %p201 = scmp.eq.s32.totalorder %s22, 0
      %p202 = por %p200, %p201
      %s203 = ssub.s32 %s23, %s35
      %p204 = scmp.eq.s32.totalorder %s203, 0
      %s206 = sadd.s32 %s205, 1
      %s207 = scalar_select %p204, %s205, %s206
      %p210 = pneg %p204
      %p211 = scmp.eq.s32.totalorder %s16, 1
      %p212 = por %p210, %p211
      %p213 = scmp.ne.s32.totalorder %s205, %s208
      %p214 = scmp.eq.s32.totalorder %s16, 0
      %p215 = por %p213, %p214
      %p216 = scmp.ne.s32.totalorder %s205, %s208
      %p217 = scmp.eq.s32.totalorder %s21, 1
      %p218 = por %p216, %p217
      %p219 = scmp.ne.s32.totalorder %s208, %s209
      %p220 = scmp.eq.s32.totalorder %s21, 0
      %p221 = por %p219, %p220
      %p222 = scmp.ne.s32.totalorder %s208, %s209
      %p223 = scmp.eq.s32.totalorder %s22, 1
      %p224 = por %p222, %p223
      %p226 = scmp.ne.s32.totalorder %s209, %s225
      %p227 = scmp.eq.s32.totalorder %s22, 0
      %p228 = por %p226, %p227
      %p229 = scmp.le.s32.totalorder 1, %s16
      %p230 = scmp.lt.s32.totalorder %s16, 3
      %p231 = pnand %p229, %p230
      %p232 = pneg %p231
      // Predicated region
      $region9: #{tpu_custom_call.1} parent=5 // pred_check
        _
      $region10: #{tpu_custom_call.1} parent=5 // pred_check_branch
        %234 = sbr.rel (%p231) target = $region12
      $region11: #{tpu_custom_call.1} parent=5 // pred_region
        %s235 = ssub.s32 %s16, 1
        // Predicated region
        $region13: #{tpu_custom_call.1} parent=11 // pred_check
          %p236 = pneg %p80
        $region14: #{tpu_custom_call.1} parent=11 // pred_check_branch
          %238 = sbr.rel (%p236) target = $region16
        $region15: #{tpu_custom_call.1} parent=11 // pred_region
          %p239 = scmp.lt.s32.totalorder %s26, 0
          %s240 = scalar_select %p239, %s26, 0
          %s241 = smul.addr %s240, 8
          %s242 = scalar_lea.vmem %s1, %s241
        $region16: #{tpu_custom_call.1} parent=11 // pred_fallthru
          _
        // Predicated region
        $region17: #{tpu_custom_call.1} parent=11 // pred_check
          %p243 = pneg %p106
        $region18: #{tpu_custom_call.1} parent=11 // pred_check_branch
          %245 = sbr.rel (%p243) target = $region20
        $region19: #{tpu_custom_call.1} parent=11 // pred_region
          %p246 = scmp.lt.s32.totalorder %s26, 0
          %s247 = scalar_select %p246, %s26, 0
          %s248 = scalar_lea.vmem %s2, %s247
        $region20: #{tpu_custom_call.1} parent=11 // pred_fallthru
          _
        // Predicated region
        $region21: #{tpu_custom_call.1} parent=11 // pred_check
          %p249 = pneg %p132
        $region22: #{tpu_custom_call.1} parent=11 // pred_check_branch
          %251 = sbr.rel (%p249) target = $region24
        $region23: #{tpu_custom_call.1} parent=11 // pred_region
          %s252 = smul.u32 16, %s26
          %p253 = scmp.lt.s32.totalorder %s252, 15
          %s254 = scalar_select %p253, %s252, 15
          %s255 = smul.addr %s254, 8
          %s256 = scalar_lea.vmem %s3, %s255
          %s257 = smul.u32 16, %s26
        $region24: #{tpu_custom_call.1} parent=11 // pred_fallthru
          _
        // Predicated region
        $region25: #{tpu_custom_call.1} parent=11 // pred_check
          %p258 = pneg %p153
        $region26: #{tpu_custom_call.1} parent=11 // pred_check_branch
          %260 = sbr.rel (%p258) target = $region28
        $region27: #{tpu_custom_call.1} parent=11 // pred_region
          _
        $region28: #{tpu_custom_call.1} parent=11 // pred_fallthru
          _
        // Predicated region
        $region29: #{tpu_custom_call.1} parent=11 // pred_check
          %p261 = pneg %p174
        $region30: #{tpu_custom_call.1} parent=11 // pred_check_branch
          %263 = sbr.rel (%p261) target = $region32
        $region31: #{tpu_custom_call.1} parent=11 // pred_region
          _
        $region32: #{tpu_custom_call.1} parent=11 // pred_fallthru
          _
        // Predicated region
        $region33: #{tpu_custom_call.1} parent=11 // pred_check
          %p264 = pneg %p195
        $region34: #{tpu_custom_call.1} parent=11 // pred_check_branch
          %266 = sbr.rel (%p264) target = $region36
        $region35: #{tpu_custom_call.1} parent=11 // pred_region
          _
        $region36: #{tpu_custom_call.1} parent=11 // pred_fallthru
          _
      $region12: #{tpu_custom_call.1} parent=5 // pred_fallthru
        _
      %p267 = scmp.lt.s32.totalorder %s16, 2
      // Predicated region
      $region37: #{tpu_custom_call.1} parent=5 // pred_check
        %p268 = pneg %p267
      $region38: #{tpu_custom_call.1} parent=5 // pred_check_branch
        %270 = sbr.rel (%p268) target = $region40
      $region39: #{tpu_custom_call.1} parent=5 // pred_region
        // Predicated region
        $region41: #{tpu_custom_call.1} parent=39 // pred_check
          %p271 = pneg %p48
        $region42: #{tpu_custom_call.1} parent=39 // pred_check_branch
          %273 = sbr.rel (%p271) target = $region44
        $region43: #{tpu_custom_call.1} parent=39 // pred_region
          %p274 = scmp.lt.s32.totalorder %s23, 1
          %s275 = scalar_select %p274, %s23, 1
          %s276 = smul.addr %s275, 8
          %s277 = scalar_lea.vmem %s0, %s276
        $region44: #{tpu_custom_call.1} parent=39 // pred_fallthru
          _
      $region40: #{tpu_custom_call.1} parent=5 // pred_fallthru
        _
      %p278 = scmp.le.s32.totalorder 1, %s16
      %p279 = scmp.lt.s32.totalorder %s16, 3
      %p280 = pnand %p278, %p279
      %p281 = pneg %p280
      // Predicated region
      $region45: #{tpu_custom_call.1} parent=5 // pred_check
        _
      $region46: #{tpu_custom_call.1} parent=5 // pred_check_branch
        %283 = sbr.rel (%p280) target = $region48
      $region47: #{tpu_custom_call.1} parent=5 // pred_region
        %s284 = ssub.s32 %s16, 1
        %p285 = scmp.lt.s32.totalorder %s25, 1
        %s286 = scalar_select %p285, %s25, 1
        %s287 = smul.addr %s286, 8
        %s288 = scalar_lea.vmem %s0, %s287
        %p289 = pneg %p54
        %p290 = pneg %p51
        %p291 = scmp.lt.s32.totalorder %s26, 0
        %s292 = scalar_select %p291, %s26, 0
        %s293 = smul.addr %s292, 8
        %s294 = scalar_lea.vmem %s1, %s293
        %p295 = pneg %p80
        %p296 = pneg %p77
        %p297 = scmp.lt.s32.totalorder %s26, 0
        %s298 = scalar_select %p297, %s26, 0
        %s299 = scalar_lea.vmem %s2, %s298
        %p300 = pneg %p106
        %p301 = pneg %p103
        %s302 = smul.u32 16, %s26
        %p303 = scmp.lt.s32.totalorder %s302, 15
        %s304 = scalar_select %p303, %s302, 15
        %s305 = smul.addr %s304, 8
        %s306 = scalar_lea.vmem %s3, %s305
        %p307 = pneg %p132
        %p308 = pneg %p129
        %p309 = pneg %p153
        %p310 = pneg %p150
        %p311 = pneg %p174
        %p312 = pneg %p171
        %p313 = pneg %p195
        %p314 = pneg %p192
        %p315 = pneg %p221
        %p316 = pneg %p218
        %s317 = sand.u32 %s208, 1
        %s318 = scalar_lea.sflag [#allocation4], %s317
        %s319 = sand.u32 %s208, 1
        %s320 = smul.addr %s319, 8
        %s321 = scalar_lea.vmem [#allocation3], %s320
        %p322 = scmp.lt.s32.totalorder %s25, 1
        %s323 = scalar_select %p322, %s25, 1
        %s324 = smul.addr %s323, 8
        %s325 = scalar_lea.vmem %s0, %s324
        %p326 = scmp.lt.s32.totalorder %s26, 0
        %s327 = scalar_select %p326, %s26, 0
        %s328 = smul.addr %s327, 8
        %s329 = scalar_lea.vmem %s1, %s328
        %p330 = scmp.lt.s32.totalorder %s26, 0
        %s331 = scalar_select %p330, %s26, 0
        %s332 = scalar_lea.vmem %s2, %s331
        %s333 = smul.u32 16, %s26
        %p334 = scmp.lt.s32.totalorder %s333, 15
        %s335 = scalar_select %p334, %s333, 15
        %s336 = smul.addr %s335, 8
        %s337 = scalar_lea.vmem %s3, %s336
        %s338 = smul.u32 16, %s26
        %p339 = scmp.eq.s32.totalorder %s26, 0
        // Predicated region
        $region49: #{tpu_custom_call.1} parent=47 // pred_check
          %p340 = pneg %p339
        $region50: #{tpu_custom_call.1} parent=47 // pred_check_branch
          %342 = sbr.rel (%p340) target = $region52
        $region51: #{tpu_custom_call.1} parent=47 // pred_region
          %vm343 = vcmask 261120
          %344 = vst.msk [vmem:[#allocation2] sm:$0xff] %vm343, 0.0
        $region52: #{tpu_custom_call.1} parent=47 // pred_fallthru
          _
        %v345 = vld [vmem:[%s325] sm:$0xff]
        %v346 = vld [vmem:[%s329] sm:$0xff]
        %v347 = vld [vmem:[%s329 + $0x8] sm:$0xff]
        %v348 = vld [vmem:[%s329 + $0x10] sm:$0xff]
        %v349 = vld [vmem:[%s329 + $0x18] sm:$0xff]
        %v350 = vld [vmem:[%s332] sm:$0x1]
        %v352 = vlaneseq
        %v353 = vshrl.u32 %v352, 7
        %v354 = vsub.s32 0, %v353
        %v355 = vrot.slane %v350, %v354
        %vm357 = vcmask 261120
        %v359 = vsel %vm357, %v345, 0
        %361 = vmatprep.subr.mxu0 0.0
        %362 = vmatpush1.msra.mxu0 %v346
        %363 = vmatprep.subr.mxu0 0.0
        %364 = vmatpush1.msra.mxu0 %v347
        %365 = vmatprep.subr.mxu0 0.0
        %366 = vmatpush1.msra.mxu0 %v348
        %367 = vmatprep.subr.mxu0 0.0
        %368 = vmatpush1.msra.mxu0 %v349
        %369 = vmatprep.subr.mxu0 0.0
        %370 = vmatpush1.msra.mxu0 0.0
        %371 = vmatprep.subr.mxu0 0.0
        %372 = vmatpush1.msra.mxu0 0.0
        %373 = vmatprep.subr.mxu0 0.0
        %374 = vmatpush1.msra.mxu0 0.0
        %375 = vmatprep.subr.mxu0 0.0
        %376 = vmatpush1.msra.mxu0 0.0
        %377 = vmatprep.subr.mxu0 0.0
        %378 = vmatpush1.msra.mxu0 0.0
        %379 = vmatprep.subr.mxu0 0.0
        %380 = vmatpush1.msra.mxu0 0.0
        %381 = vmatprep.subr.mxu0 0.0
        %382 = vmatpush1.msra.mxu0 0.0
        %383 = vmatprep.subr.mxu0 0.0
        %384 = vmatpush1.msra.mxu0 0.0
        %385 = vmatprep.subr.mxu0 0.0
        %386 = vmatpush1.msra.mxu0 0.0
        %387 = vmatprep.subr.mxu0 0.0
        %388 = vmatpush1.msra.mxu0 0.0
        %389 = vmatprep.subr.mxu0 0.0
        %390 = vmatpush1.msra.mxu0 0.0
        %391 = vmatprep.subr.mxu0 0.0
        %392 = vmatpush1.msra.mxu0 0.0
        %393 = vmatprep.subr.mxu0 0.0
        %394 = vmatpush1.msra.mxu0 0.0
        %395 = vmatprep.subr.mxu0 0.0
        %396 = vmatpush1.msra.mxu0 0.0
        %397 = vmatprep.subr.mxu0 0.0
        %398 = vmatpush1.msra.mxu0 0.0
        %399 = vmatprep.subr.mxu0 0.0
        %400 = vmatpush1.msra.mxu0 0.0
        %401 = vmatprep.subr.mxu0 0.0
        %402 = vmatpush1.msra.mxu0 0.0
        %403 = vmatprep.subr.mxu0 0.0
        %404 = vmatpush1.msra.mxu0 0.0
        %405 = vmatprep.subr.mxu0 0.0
        %406 = vmatpush1.msra.mxu0 0.0
        %407 = vmatprep.subr.mxu0 0.0
        %408 = vmatpush1.msra.mxu0 0.0
        %409 = vmatprep.subr.mxu0 0.0
        %410 = vmatpush1.msra.mxu0 0.0
        %411 = vmatprep.subr.mxu0 0.0
        %412 = vmatpush1.msra.mxu0 0.0
        %413 = vmatprep.subr.mxu0 0.0
        %414 = vmatpush1.msra.mxu0 0.0
        %415 = vmatprep.subr.mxu0 0.0
        %416 = vmatpush1.msra.mxu0 0.0
        %417 = vmatprep.subr.mxu0 0.0
        %418 = vmatpush1.msra.mxu0 0.0
        %419 = vmatprep.subr.mxu0 0.0
        %420 = vmatpush1.msra.mxu0 0.0
        %421 = vmatprep.subr.mxu0 0.0
        %422 = vmatpush1.msra.mxu0 0.0
        %423 = vmatprep.subr.mxu0 0.0
        %424 = vmatpush1.msra.mxu0 0.0
        %425 = vmatprep.mubr.f32.mxu0 0.0
        %426 = vmatmul.mubr.f32.gmra.mrb[0].mxu0 %v359
        %v427 = vpop.f32.mrb[0].mxu0
        %v428 = vadd.f32 %v355, %v427
        %v429 = vpop.f32.mrb[0].mxu0
        %430 = vdwg.mxu0
        %v431 = vmax.f32 %v428, 0.0
        %v432 = vld [vmem:[#allocation2] sm:$0xff]
        %v433 = vld [vmem:[%s337] sm:$0xff]
        %v434 = vld [vmem:[%s337 + $0x8] sm:$0xff]
        %v435 = vld [vmem:[%s337 + $0x10] sm:$0xff]
        %v436 = vld [vmem:[%s337 + $0x18] sm:$0xff]
        %v437 = vld [vmem:[%s337 + $0x20] sm:$0xff]
        %v438 = vld [vmem:[%s337 + $0x28] sm:$0xff]
        %v439 = vld [vmem:[%s337 + $0x30] sm:$0xff]
        %v440 = vld [vmem:[%s337 + $0x38] sm:$0xff]
        %v441 = vld [vmem:[%s337 + $0x40] sm:$0xff]
        %v442 = vld [vmem:[%s337 + $0x48] sm:$0xff]
        %v443 = vld [vmem:[%s337 + $0x50] sm:$0xff]
        %v444 = vld [vmem:[%s337 + $0x58] sm:$0xff]
        %v445 = vld [vmem:[%s337 + $0x60] sm:$0xff]
        %v446 = vld [vmem:[%s337 + $0x68] sm:$0xff]
        %v447 = vld [vmem:[%s337 + $0x70] sm:$0xff]
        %v448 = vld [vmem:[%s337 + $0x78] sm:$0xff]
        %449 = vmatprep.subr.mxu0 0.0
        %450 = vmatpush1.msra.mxu0 %v433
        %451 = vmatprep.subr.mxu0 0.0
        %452 = vmatpush1.msra.mxu0 %v434
        %453 = vmatprep.subr.mxu0 0.0
        %454 = vmatpush1.msra.mxu0 %v435
        %455 = vmatprep.subr.mxu0 0.0
        %456 = vmatpush1.msra.mxu0 %v436
        %457 = vmatprep.subr.mxu0 0.0
        %458 = vmatpush1.msra.mxu0 %v437
        %459 = vmatprep.subr.mxu0 0.0
        %460 = vmatpush1.msra.mxu0 %v438
        %461 = vmatprep.subr.mxu0 0.0
        %462 = vmatpush1.msra.mxu0 %v439
        %463 = vmatprep.subr.mxu0 0.0
        %464 = vmatpush1.msra.mxu0 %v440
        %465 = vmatprep.subr.mxu0 0.0
        %466 = vmatpush1.msra.mxu0 %v441
        %467 = vmatprep.subr.mxu0 0.0
        %468 = vmatpush1.msra.mxu0 %v442
        %469 = vmatprep.subr.mxu0 0.0
        %470 = vmatpush1.msra.mxu0 %v443
        %471 = vmatprep.subr.mxu0 0.0
        %472 = vmatpush1.msra.mxu0 %v444
        %473 = vmatprep.subr.mxu0 0.0
        %474 = vmatpush1.msra.mxu0 %v445
        %475 = vmatprep.subr.mxu0 0.0
        %476 = vmatpush1.msra.mxu0 %v446
        %477 = vmatprep.subr.mxu0 0.0
        %478 = vmatpush1.msra.mxu0 %v447
        %479 = vmatprep.subr.mxu0 0.0
        %480 = vmatpush1.msra.mxu0 %v448
        %481 = vmatprep.subr.mxu0 0.0
        %482 = vmatpush1.msra.mxu0 0.0
        %483 = vmatprep.subr.mxu0 0.0
        %484 = vmatpush1.msra.mxu0 0.0
        %485 = vmatprep.subr.mxu0 0.0
        %486 = vmatpush1.msra.mxu0 0.0
        %487 = vmatprep.subr.mxu0 0.0
        %488 = vmatpush1.msra.mxu0 0.0
        %489 = vmatprep.subr.mxu0 0.0
        %490 = vmatpush1.msra.mxu0 0.0
        %491 = vmatprep.subr.mxu0 0.0
        %492 = vmatpush1.msra.mxu0 0.0
        %493 = vmatprep.subr.mxu0 0.0
        %494 = vmatpush1.msra.mxu0 0.0
        %495 = vmatprep.subr.mxu0 0.0
        %496 = vmatpush1.msra.mxu0 0.0
        %497 = vmatprep.subr.mxu0 0.0
        %498 = vmatpush1.msra.mxu0 0.0
        %499 = vmatprep.subr.mxu0 0.0
        %500 = vmatpush1.msra.mxu0 0.0
        %501 = vmatprep.subr.mxu0 0.0
        %502 = vmatpush1.msra.mxu0 0.0
        %503 = vmatprep.subr.mxu0 0.0
        %504 = vmatpush1.msra.mxu0 0.0
        %505 = vmatprep.subr.mxu0 0.0
        %506 = vmatpush1.msra.mxu0 0.0
        %507 = vmatprep.subr.mxu0 0.0
        %508 = vmatpush1.msra.mxu0 0.0
        %509 = vmatprep.subr.mxu0 0.0
        %510 = vmatpush1.msra.mxu0 0.0
        %511 = vmatprep.subr.mxu0 0.0
        %512 = vmatpush1.msra.mxu0 0.0
        %513 = vmatprep.mubr.f32.mxu0 0.0
        %514 = vmatmul.mubr.f32.gmra.mrb[0].mxu0 %v431
        %v515 = vpop.f32.mrb[0].mxu0
        %v516 = vadd.f32 0.0, %v515
        %v517 = vpop.f32.mrb[0].mxu0
        %518 = vdwg.mxu0
        %v519 = vadd.f32 %v432, %v516
        %520 = vst.msk [vmem:[#allocation2] sm:$0xff] %vm357, %v519
        // Predicated region
        $region53: #{tpu_custom_call.1} parent=47 // pred_check
          %p521 = pneg %p339
        $region54: #{tpu_custom_call.1} parent=47 // pred_check_branch
          %523 = sbr.rel (%p521) target = $region56
        $region55: #{tpu_custom_call.1} parent=47 // pred_region
          %v524 = vld [vmem:[%s325] sm:$0xff]
          %v525 = vld [vmem:[#allocation2] sm:$0xff]
          %v526 = vadd.f32 %v524, %v525
          %v527 = vld [vmem:[%s4] sm:$0x1]
          %v529 = vlaneseq
          %v530 = vshrl.u32 %v529, 7
          %v531 = vsub.s32 0, %v530
          %v532 = vrot.slane %v527, %v531
          %v534 = vadd.f32 %v526, %v532
          %v535 = vsel %vm357, %v534, 0.0
          %536 = vadd.xlane.f32.xlu0 %v535
          %v537 = vpop.xlane.xlu0 %536
          %v538 = vrcp.pop 32.0
          %v539 = vmul.f32 %v537, %v538
          %v540 = vsub.f32 %v534, %v539
          %v541 = vmul.f32 %v540, %v540
          %v542 = vsel %vm357, %v541, 0.0
          %543 = vadd.xlane.f32.xlu0 %v542
          %v544 = vpop.xlane.xlu0 %543
          %v545 = vmul.f32 %v544, %v538
          %v546 = vadd.f32 %v545, 1e-05
          %v547 = vrsqrt.pop %v546
          %v548 = vmul.f32 %v540, %v547
          %v549 = vld [vmem:[%s5] sm:$0x1]
          %v551 = vlaneseq
          %v552 = vshrl.u32 %v551, 7
          %v553 = vsub.s32 0, %v552
          %v554 = vrot.slane %v549, %v553
          %v556 = vmul.f32 %v548, %v554
          %v557 = vld [vmem:[%s6] sm:$0x1]
          %v559 = vlaneseq
          %v560 = vshrl.u32 %v559, 7
          %v561 = vsub.s32 0, %v560
          %v562 = vrot.slane %v557, %v561
          %v564 = vadd.f32 %v556, %v562
          %565 = vst.msk [vmem:[%s321] sm:$0xff] %vm357, %v564
        $region56: #{tpu_custom_call.1} parent=47 // pred_fallthru
          _
        %s566 = sand.u32 %s208, 1
        %s567 = scalar_lea.sflag [#allocation4], %s566
        %s568 = sand.u32 %s208, 1
        %s569 = smul.addr %s568, 8
        %s570 = scalar_lea.vmem [#allocation3], %s569
        // Predicated region
        $region57: #{tpu_custom_call.1} parent=47 // pred_check
          %p571 = pneg %p218
        $region58: #{tpu_custom_call.1} parent=47 // pred_check_branch
          %573 = sbr.rel (%p571) target = $region60
        $region59: #{tpu_custom_call.1} parent=47 // pred_region
          %s575 = ssub.s32 128, 128
          %576 = vsyncadd %s567, %s575
          %s577 = smul.addr %s25, 128
          %s578 = scalar_lea.hbm %s7, %s577
          %s580 = sshll.u32 %s570, 4
          %s581 = int_to_ptr.vmem [resolvable:$true] %s580
          %583 = dma.vmem_to_hbm [thread:$0]  %s581, 128, %s578, %s567
        $region60: #{tpu_custom_call.1} parent=47 // pred_fallthru
          _
      $region48: #{tpu_custom_call.1} parent=5 // pred_fallthru
        _
      %p584 = scmp.le.s32.totalorder 2, %s16
      // Predicated region
      $region61: #{tpu_custom_call.1} parent=5 // pred_check
        %p585 = pneg %p584
      $region62: #{tpu_custom_call.1} parent=5 // pred_check_branch
        %587 = sbr.rel (%p585) target = $region64
      $region63: #{tpu_custom_call.1} parent=5 // pred_region
        %s588 = ssub.s32 %s16, 2
        // Predicated region
        $region65: #{tpu_custom_call.1} parent=63 // pred_check
          %p589 = pneg %p224
        $region66: #{tpu_custom_call.1} parent=63 // pred_check_branch
          %591 = sbr.rel (%p589) target = $region68
        $region67: #{tpu_custom_call.1} parent=63 // pred_region
          %s592 = sand.u32 %s209, 1
          %s593 = scalar_lea.sflag [#allocation4], %s592
          %s594 = sand.u32 %s209, 1
          %s595 = smul.addr %s594, 8
          %s596 = scalar_lea.vmem [#allocation3], %s595
          %597 = dma.done %s593, 128
        $region68: #{tpu_custom_call.1} parent=63 // pred_fallthru
          _
      $region64: #{tpu_custom_call.1} parent=5 // pred_fallthru
        _
    $region6: #{tpu_custom_call.1} parent=1 // loop_footer
      %s20 = sadd.s32 1, %s16
    $region7: #{tpu_custom_call.1} parent=1 // loop_footer_branch
      %15 = sbr.rel target = $region3
    $region8: #{tpu_custom_call.1} parent=1 // loop_exit
      _
    %598 = vsyncpa [#allocation4], 1
    %s599 = scalar_lea.sflag [#allocation4], 1
    %600 = vsyncpa %s599, 1

</llo_original>
